<compile_context>
chip_gen: v6e
topology: v6e:2x2x1
jax: 0.10.0
libtpu: 0.0.40
codegen_flags: <defaults>
</compile_context>

<pallas_src>
import functools

import jax
import jax.numpy as jnp
from jax.experimental import pallas as pl
from jax.experimental.pallas import tpu as pltpu

EPS = 1e-5
TM = 256    # batch tile            (multiple of 16; MXU M rows)
TN = 512    # output-feature tile   (lane-dense, multiple of 128/256)
TK = 512    # in-feature (reduction) tile


def _round_up(x, m):
    return (x + m - 1) // m * m


# -------- Pass 1: BatchNorm1d batch statistics -> per-feature (scale, shift) --------
def _stats_kernel(x_ref, gamma_ref, beta_ref, scale_ref, shift_ref,
                  s_ref, ss_ref, *, inv_b):
    b = pl.program_id(1)                       # batch-tile (reduction) axis, last

    @pl.when(b == 0)
    def _():
        s_ref[...] = jnp.zeros_like(s_ref)
        ss_ref[...] = jnp.zeros_like(ss_ref)

    x = x_ref[...]                             # (tb, tk) f32; padded rows are 0
    s_ref[...] += jnp.sum(x, axis=0, keepdims=True)
    ss_ref[...] += jnp.sum(x * x, axis=0, keepdims=True)

    @pl.when(b == pl.num_programs(1) - 1)
    def _():
        mean = s_ref[...] * inv_b              # divide by the REAL batch size
        var = ss_ref[...] * inv_b - mean * mean   # biased batch variance
        scale = gamma_ref[...] * jax.lax.rsqrt(var + EPS)
        scale_ref[...] = scale
        shift_ref[...] = beta_ref[...] - mean * scale


def _bn_stats(x_pad, gamma_pad, beta_pad, *, batch, tb, tk):
    Bp, Fp = x_pad.shape
    kernel = functools.partial(_stats_kernel, inv_b=1.0 / batch)
    return pl.pallas_call(
        kernel,
        out_shape=(jax.ShapeDtypeStruct((1, Fp), jnp.float32),
                   jax.ShapeDtypeStruct((1, Fp), jnp.float32)),
        grid=(Fp // tk, Bp // tb),             # reduction (batch) axis last
        in_specs=[
            pl.BlockSpec((tb, tk), lambda f, b: (b, f)),
            pl.BlockSpec((1, tk), lambda f, b: (0, f)),
            pl.BlockSpec((1, tk), lambda f, b: (0, f)),
        ],
        out_specs=(pl.BlockSpec((1, tk), lambda f, b: (0, f)),
                   pl.BlockSpec((1, tk), lambda f, b: (0, f))),
        scratch_shapes=[pltpu.VMEM((1, tk), jnp.float32),
                        pltpu.VMEM((1, tk), jnp.float32)],
        compiler_params=pltpu.CompilerParams(
            dimension_semantics=("parallel", "arbitrary")),
    )(x_pad, gamma_pad, beta_pad)


# -------- Pass 2: out = (x * scale + shift) @ w_ternary.T + bias --------
def _matmul_kernel(x_ref, scale_ref, shift_ref, w_ref, bias_ref, o_ref, acc_ref):
    k = pl.program_id(2)

    @pl.when(k == 0)
    def _():
        # Fold the bias into the accumulator init.
        acc_ref[...] = jnp.broadcast_to(bias_ref[...], acc_ref.shape)

    # BN affine folded into the x-load (f32 VPU), then one cast to bf16.
    xn = (x_ref[...] * scale_ref[...] + shift_ref[...]).astype(jnp.bfloat16)
    # Weight arrives pre-transposed (tk, tn) as int8 ({-1,0,+1} exact);
    # cast on the VPU so the MXU runs plain bf16 x bf16 on every generation.
    w = w_ref[...].astype(jnp.bfloat16)
    acc_ref[...] += jnp.dot(xn, w, preferred_element_type=jnp.float32)

    @pl.when(k == pl.num_programs(2) - 1)
    def _():
        o_ref[...] = acc_ref[...]


def _ternary_matmul(x_pad, scale, shift, w_fo_pad, bias_pad, *, tm, tn, tk):
    Bp, Fp = x_pad.shape
    Op = w_fo_pad.shape[1]
    return pl.pallas_call(
        _matmul_kernel,
        out_shape=jax.ShapeDtypeStruct((Bp, Op), jnp.float32),
        grid=(Bp // tm, Op // tn, Fp // tk),   # reduction axis last
        in_specs=[
            pl.BlockSpec((tm, tk), lambda i, j, k: (i, k)),   # raw x (f32)
            pl.BlockSpec((1, tk), lambda i, j, k: (0, k)),    # BN scale
            pl.BlockSpec((1, tk), lambda i, j, k: (0, k)),    # BN shift
            pl.BlockSpec((tk, tn), lambda i, j, k: (k, j)),   # int8 weight (F, O)
            pl.BlockSpec((1, tn), lambda i, j, k: (0, j)),    # bias tile
        ],
        out_specs=pl.BlockSpec((tm, tn), lambda i, j, k: (i, j)),
        scratch_shapes=[pltpu.VMEM((tm, tn), jnp.float32)],
        compiler_params=pltpu.CompilerParams(
            dimension_semantics=("parallel", "parallel", "arbitrary"),
            vmem_limit_bytes=32 * 1024 * 1024),
    )(x_pad, scale, shift, w_fo_pad, bias_pad)


def ternary_linear_forward(x, w_ternary, bias, gamma, beta, *, tm=TM, tn=TN, tk=TK):
    """TernaryLinear.forward: BatchNorm1d(x) @ w_ternary.T + bias."""
    B, F = x.shape
    O = w_ternary.shape[0]

    # Clamp tiles to the padded problem so tiny layers don't over-pad; keeps
    # tm a multiple of 16 (bf16 sublane packing) and tk/tn multiples of 128.
    tm = min(tm, _round_up(B, 16))
    tk = min(tk, _round_up(F, 128))
    tn = min(tn, _round_up(O, 128))
    Bp, Fp, Op = _round_up(B, tm), _round_up(F, tk), _round_up(O, tn)

    # Wrapper-side layout plumbing only (no hoisted compute): zero-pad to tile
    # multiples, pre-transpose the weight to (F, O) and narrow it to int8.
    x_pad = jnp.pad(x.astype(jnp.float32), ((0, Bp - B), (0, Fp - F)))
    gamma_pad = jnp.pad(gamma.astype(jnp.float32), (0, Fp - F),
                        constant_values=1.0).reshape(1, Fp)
    beta_pad = jnp.pad(beta.astype(jnp.float32), (0, Fp - F)).reshape(1, Fp)
    w_fo_pad = jnp.pad(w_ternary.T.astype(jnp.int8), ((0, Fp - F), (0, Op - O)))
    bias_pad = jnp.pad(bias.astype(jnp.float32), (0, Op - O)).reshape(1, Op)

    scale, shift = _bn_stats(x_pad, gamma_pad, beta_pad, batch=B, tb=tm, tk=tk)
    out = _ternary_matmul(x_pad, scale, shift, w_fo_pad, bias_pad,
                          tm=tm, tn=tn, tk=tk)
    return out[:B, :O]


def make_params(key, in_features, out_features):
    kw, kb = jax.random.split(key)
    # kaiming_uniform_(a=sqrt(5)) on (out, in): bound = 1/sqrt(fan_in)
    bound = 1.0 / jnp.sqrt(jnp.float32(in_features))
    weight = jax.random.uniform(kw, (out_features, in_features), jnp.float32,
                                -bound, bound)
    bias = jax.random.uniform(kb, (out_features,), jnp.float32, -bound, bound)
    gamma = jnp.ones((in_features,), jnp.float32)   # BatchNorm1d weight
    beta = jnp.zeros((in_features,), jnp.float32)   # BatchNorm1d bias
    # alpha = sum(weight rows) / (n*m) with n=m=1 -> per-column sum, shape (in,)
    # TODO(synk): torch computes alpha from the *pre-reset* (uninitialized)
    # weight; here it uses the deterministic synthetic weight (same formula).
    alpha = jnp.sum(weight, axis=0)
    # Exact torch formula: where(d > 0, 1, where(d < 1, -1, 0))
    d = weight - alpha[None, :]
    w_ternary = jnp.where(d > 0, 1.0, jnp.where(d < 1, -1.0, 0.0)).astype(jnp.float32)
    return weight, w_ternary, bias, gamma, beta


def reference_forward(x, w_ternary, bias, gamma, beta):
    mean = jnp.mean(x, axis=0, keepdims=True)
    var = jnp.mean((x - mean) ** 2, axis=0, keepdims=True)
    x_norm = (x - mean) / jnp.sqrt(var + EPS) * gamma[None, :] + beta[None, :]
    return x_norm @ w_ternary.T + bias[None, :]


if __name__ == "__main__":
    B, IN_F, OUT_F = 8, 32, 16
    key = jax.random.PRNGKey(0)
    kx, kp = jax.random.split(key)
    x = jax.random.normal(kx, (B, IN_F), jnp.float32)
    _, w_ternary, bias, gamma, beta = make_params(kp, IN_F, OUT_F)

    out = ternary_linear_forward(x, w_ternary, bias, gamma, beta)
    out = jax.block_until_ready(out)

    ref = reference_forward(x, w_ternary, bias, gamma, beta)
    assert out.shape == (B, OUT_F)
    # Activations are cast to bf16 for the MXU (ternary weights are exact in
    # int8/bf16), giving ~0.2-0.4% relative rounding vs the pure-f32 reference.
    assert jnp.allclose(out, ref, atol=5e-2, rtol=1e-2), (
        f"max abs err {jnp.max(jnp.abs(out - ref))}")
    print("KERNEL_OK")
</pallas_src>

<mosaic_0001>
module attributes {stable_mosaic.version = 11 : i64} {
  func.func @_stats_kernel(%arg0: i32, %arg1: i32, %arg2: memref<16x128xf32, #tpu.memory_space<vmem>>, %arg3: memref<1x128xf32, #tpu.memory_space<vmem>>, %arg4: memref<1x128xf32, #tpu.memory_space<vmem>>, %arg5: memref<1x128xf32, #tpu.memory_space<vmem>>, %arg6: memref<1x128xf32, #tpu.memory_space<vmem>>, %arg7: memref<1x128xf32, #tpu.memory_space<vmem>>, %arg8: memref<1x128xf32, #tpu.memory_space<vmem>>) attributes {dimension_semantics = [#tpu.dimension_semantics<parallel>, #tpu.dimension_semantics<arbitrary>], iteration_bounds = array<i64: 1, 1>, scalar_prefetch = 0 : i64, scratch_operands = 2 : i64, tpu.core_type = #tpu.core_type<tc>, window_params = [{transform_indices = @transform_0, window_bounds = array<i64: 16, 128>}, {transform_indices = @transform_1, window_bounds = array<i64: 1, 128>}, {transform_indices = @transform_2, window_bounds = array<i64: 1, 128>}, {transform_indices = @transform_3, window_bounds = array<i64: 1, 128>}, {transform_indices = @transform_4, window_bounds = array<i64: 1, 128>}]} {
    %c0_i32 = arith.constant 0 : i32
    %0 = arith.cmpi eq, %arg1, %c0_i32 : i32
    %1 = arith.extui %0 : i1 to i32
    %c0_i32_0 = arith.constant 0 : i32
    %2 = arith.cmpi ne, %1, %c0_i32_0 : i32
    scf.if %2 {
      %cst_13 = arith.constant 0.000000e+00 : f32
      %18 = vector.broadcast %cst_13 : f32 to vector<1x128xf32>
      %c0_14 = arith.constant 0 : index
      %c0_15 = arith.constant 0 : index
      %19 = vector.load %arg7[%c0_14, %c0_15] : memref<1x128xf32, #tpu.memory_space<vmem>>, vector<1x128xf32>
      tpu.vector_store %arg7[%c0_14, %c0_15], %18 {strides = array<i32>} : memref<1x128xf32, #tpu.memory_space<vmem>>, vector<1x128xf32>,
      %cst_16 = arith.constant 0.000000e+00 : f32
      %20 = vector.broadcast %cst_16 : f32 to vector<1x128xf32>
      %c0_17 = arith.constant 0 : index
      %c0_18 = arith.constant 0 : index
      %21 = vector.load %arg8[%c0_17, %c0_18] : memref<1x128xf32, #tpu.memory_space<vmem>>, vector<1x128xf32>
      tpu.vector_store %arg8[%c0_17, %c0_18], %20 {strides = array<i32>} : memref<1x128xf32, #tpu.memory_space<vmem>>, vector<1x128xf32>,
    } else {
    }
    %c0 = arith.constant 0 : index
    %c0_1 = arith.constant 0 : index
    %3 = vector.load %arg2[%c0, %c0_1] : memref<16x128xf32, #tpu.memory_space<vmem>>, vector<16x128xf32>
    %c0_2 = arith.constant 0 : index
    %c0_3 = arith.constant 0 : index
    %4 = vector.load %arg7[%c0_2, %c0_3] : memref<1x128xf32, #tpu.memory_space<vmem>>, vector<1x128xf32>
    %cst = arith.constant dense<0.000000e+00> : vector<128xf32>
    %5 = vector.multi_reduction <add>, %3, %cst [0] : vector<16x128xf32> to vector<128xf32>
    %6 = vector.shape_cast %5 : vector<128xf32> to vector<1x128xf32>
    %7 = arith.addf %4, %6 : vector<1x128xf32>
    %c0_4 = arith.constant 0 : index
    %c0_5 = arith.constant 0 : index
    %8 = vector.load %arg7[%c0_4, %c0_5] : memref<1x128xf32, #tpu.memory_space<vmem>>, vector<1x128xf32>
    tpu.vector_store %arg7[%c0_4, %c0_5], %7 {strides = array<i32>} : memref<1x128xf32, #tpu.memory_space<vmem>>, vector<1x128xf32>,
    %c0_6 = arith.constant 0 : index
    %c0_7 = arith.constant 0 : index
    %9 = vector.load %arg8[%c0_6, %c0_7] : memref<1x128xf32, #tpu.memory_space<vmem>>, vector<1x128xf32>
    %10 = arith.mulf %3, %3 : vector<16x128xf32>
    %cst_8 = arith.constant dense<0.000000e+00> : vector<128xf32>
    %11 = vector.multi_reduction <add>, %10, %cst_8 [0] : vector<16x128xf32> to vector<128xf32>
    %12 = vector.shape_cast %11 : vector<128xf32> to vector<1x128xf32>
    %13 = arith.addf %9, %12 : vector<1x128xf32>
    %c0_9 = arith.constant 0 : index
    %c0_10 = arith.constant 0 : index
    %14 = vector.load %arg8[%c0_9, %c0_10] : memref<1x128xf32, #tpu.memory_space<vmem>>, vector<1x128xf32>
    tpu.vector_store %arg8[%c0_9, %c0_10], %13 {strides = array<i32>} : memref<1x128xf32, #tpu.memory_space<vmem>>, vector<1x128xf32>,
    %c0_i32_11 = arith.constant 0 : i32
    %15 = arith.cmpi eq, %arg1, %c0_i32_11 : i32
    %16 = arith.extui %15 : i1 to i32
    %c0_i32_12 = arith.constant 0 : i32
    %17 = arith.cmpi ne, %16, %c0_i32_12 : i32
    scf.if %17 {
      %c0_13 = arith.constant 0 : index
      %c0_14 = arith.constant 0 : index
      %18 = vector.load %arg7[%c0_13, %c0_14] : memref<1x128xf32, #tpu.memory_space<vmem>>, vector<1x128xf32>
      %cst_15 = arith.constant 1.250000e-01 : f32
      %19 = vector.broadcast %cst_15 : f32 to vector<1x128xf32>
      %20 = arith.mulf %18, %19 : vector<1x128xf32>
      %c0_16 = arith.constant 0 : index
      %c0_17 = arith.constant 0 : index
      %21 = vector.load %arg8[%c0_16, %c0_17] : memref<1x128xf32, #tpu.memory_space<vmem>>, vector<1x128xf32>
      %cst_18 = arith.constant 1.250000e-01 : f32
      %22 = vector.broadcast %cst_18 : f32 to vector<1x128xf32>
      %23 = arith.mulf %21, %22 : vector<1x128xf32>
      %24 = arith.mulf %20, %20 : vector<1x128xf32>
      %25 = arith.subf %23, %24 : vector<1x128xf32>
      %c0_19 = arith.constant 0 : index
      %c0_20 = arith.constant 0 : index
      %26 = vector.load %arg3[%c0_19, %c0_20] : memref<1x128xf32, #tpu.memory_space<vmem>>, vector<1x128xf32>
      %cst_21 = arith.constant 9.99999974E-6 : f32
      %27 = vector.broadcast %cst_21 : f32 to vector<1x128xf32>
      %28 = arith.addf %25, %27 : vector<1x128xf32>
      %29 = math.rsqrt %28 : vector<1x128xf32>
      %30 = arith.mulf %26, %29 : vector<1x128xf32>
      %c0_22 = arith.constant 0 : index
      %c0_23 = arith.constant 0 : index
      %31 = vector.load %arg5[%c0_22, %c0_23] : memref<1x128xf32, #tpu.memory_space<vmem>>, vector<1x128xf32>
      tpu.vector_store %arg5[%c0_22, %c0_23], %30 {strides = array<i32>} : memref<1x128xf32, #tpu.memory_space<vmem>>, vector<1x128xf32>,
      %c0_24 = arith.constant 0 : index
      %c0_25 = arith.constant 0 : index
      %32 = vector.load %arg4[%c0_24, %c0_25] : memref<1x128xf32, #tpu.memory_space<vmem>>, vector<1x128xf32>
      %33 = arith.mulf %20, %30 : vector<1x128xf32>
      %34 = arith.subf %32, %33 : vector<1x128xf32>
      %c0_26 = arith.constant 0 : index
      %c0_27 = arith.constant 0 : index
      %35 = vector.load %arg6[%c0_26, %c0_27] : memref<1x128xf32, #tpu.memory_space<vmem>>, vector<1x128xf32>
      tpu.vector_store %arg6[%c0_26, %c0_27], %34 {strides = array<i32>} : memref<1x128xf32, #tpu.memory_space<vmem>>, vector<1x128xf32>,
    } else {
    }
    return
  }
  func.func @transform_0(%arg0: i32, %arg1: i32) -> (i32, i32) {
    %c0_i32 = arith.constant 0 : i32
    return %arg1, %arg0 : i32, i32
  }
  func.func @transform_1(%arg0: i32, %arg1: i32) -> (i32, i32) {
    %c0_i32 = arith.constant 0 : i32
    %c0_i32_0 = arith.constant 0 : i32
    return %c0_i32, %arg0 : i32, i32
  }
  func.func @transform_2(%arg0: i32, %arg1: i32) -> (i32, i32) {
    %c0_i32 = arith.constant 0 : i32
    %c0_i32_0 = arith.constant 0 : i32
    return %c0_i32, %arg0 : i32, i32
  }
  func.func @transform_3(%arg0: i32, %arg1: i32) -> (i32, i32) {
    %c0_i32 = arith.constant 0 : i32
    %c0_i32_0 = arith.constant 0 : i32
    return %c0_i32, %arg0 : i32, i32
  }
  func.func @transform_4(%arg0: i32, %arg1: i32) -> (i32, i32) {
    %c0_i32 = arith.constant 0 : i32
    %c0_i32_0 = arith.constant 0 : i32
    return %c0_i32, %arg0 : i32, i32
  }
}

</mosaic_0001>

<llo_original>
// kernel: tpu_custom_call.1
$region0: #{tpu_custom_call.1}
  #allocation0 [shape = 'u32[]', space=smem, size = 0x4, offset = 0x4, fixed_abs, tag = 'smem constant byte address 0x4 - core index']
  #allocation1 [shape = 'u32[144,128]{1,0:T(1,128)}', space=vmem, size = 0x12000, scoped, tag = 'internal scratch']
  #allocation2 [shape = 'f32[1,128]{1,0:T(1,128)}', space=vmem, size = 0x200, scoped, tag = 'scratch operand']
  #allocation3 [shape = 'f32[1,128]{1,0:T(1,128)}', space=vmem, size = 0x200, scoped, tag = 'scratch operand']
  %s0 = inlined_call_operand.hbm [shape: f32[16,128], index: 0, kind: input, shape index: {}]
  %s1 = inlined_call_operand.vmem [shape: f32[1,128], index: 1, kind: input, shape index: {}]
  %s2 = inlined_call_operand.vmem [shape: f32[1,128], index: 2, kind: input, shape index: {}]
  %s3 = inlined_call_operand.hbm [shape: f32[1,128], index: 3, kind: output, shape index: {0}]
  %s4 = inlined_call_operand.hbm [shape: f32[1,128], index: 4, kind: output, shape index: {1}]
  %5 = xla_tuple %s3, %s4
  %s6 = sld [smem:[#allocation0]]
  $region42: #{tpu_custom_call.1} parent=0
    _
  %s8 = ssub.s32 1, %s6
  %s9 = scalar_select 0, %s8, %s6
  $region1: #{tpu_custom_call.1} parent=0
    #allocation4 [shape = 'u8[8192]{0}', space=vmem, size = 0x2000, scoped, tag = 'input window, operand 0, single buffered']
    #allocation5 [shape = 's32[1]{0}', space=sflag, size = 0x4, scoped, tag = 'scoped memory for tpu_custom_call.1']
    #allocation6 [shape = 's32[1]{0}', space=sflag, size = 0x4, scoped, tag = 'scoped memory for tpu_custom_call.1']
    #allocation7 [shape = 'u8[512]{0}', space=vmem, size = 0x400, scoped, tag = 'output window, operand 0, single buffered']
    #allocation8 [shape = 'u8[512]{0}', space=vmem, size = 0x400, scoped, tag = 'output window, operand 1, single buffered']
    #allocation9 [shape = 's32[1]{0}', space=sflag, size = 0x4, scoped, tag = 'scoped memory for tpu_custom_call.1']
    %10 = vsyncpa [#allocation5], 0
    %11 = vsyncpa [#allocation6], 0
    %12 = vsyncpa [#allocation9], 0
    // Predicated region
    $region2: #{tpu_custom_call.1} parent=1 // pred_check
      _
    $region3: #{tpu_custom_call.1} parent=1 // pred_check_branch
      %14 = sbr.rel (0) target = $region5
    $region4: #{tpu_custom_call.1} parent=1 // pred_region
      %s16 = ssub.s32 256, 256
      %17 = vsyncadd [#allocation5], %s16
      %s18 = sshll.u32 [#allocation4], 4
      %s19 = int_to_ptr.vmem [resolvable:$true] %s18
      %24 = dma.hbm_to_vmem [thread:$0]  %s0, 256, %s19, [#allocation5], 128, 128, 8
    $region5: #{tpu_custom_call.1} parent=1 // pred_fallthru
      _
    // Predicated region
    $region6: #{tpu_custom_call.1} parent=1 // pred_check
      _
    $region7: #{tpu_custom_call.1} parent=1 // pred_check_branch
      %26 = sbr.rel (0) target = $region9
    $region8: #{tpu_custom_call.1} parent=1 // pred_region
      _
    $region9: #{tpu_custom_call.1} parent=1 // pred_fallthru
      _
    // Predicated region
    $region10: #{tpu_custom_call.1} parent=1 // pred_check
      _
    $region11: #{tpu_custom_call.1} parent=1 // pred_check_branch
      %28 = sbr.rel (0) target = $region13
    $region12: #{tpu_custom_call.1} parent=1 // pred_region
      _
    $region13: #{tpu_custom_call.1} parent=1 // pred_fallthru
      _
    // Predicated region
    $region14: #{tpu_custom_call.1} parent=1 // pred_check
      _
    $region15: #{tpu_custom_call.1} parent=1 // pred_check_branch
      %30 = sbr.rel (0) target = $region17
    $region16: #{tpu_custom_call.1} parent=1 // pred_region
      %31 = dma.done [#allocation5], 256
    $region17: #{tpu_custom_call.1} parent=1 // pred_fallthru
      _
    %p32 = scmp.eq.s32.totalorder 0, 0
    // Predicated region
    $region18: #{tpu_custom_call.1} parent=1 // pred_check
      %p33 = pneg %p32
    $region19: #{tpu_custom_call.1} parent=1 // pred_check_branch
      %35 = sbr.rel (%p33) target = $region21
    $region20: #{tpu_custom_call.1} parent=1 // pred_region
      %36 = vst [vmem:[#allocation2] sm:$0x1] 0.0
      %37 = vst [vmem:[#allocation3] sm:$0x1] 0.0
    $region21: #{tpu_custom_call.1} parent=1 // pred_fallthru
      _
    %v38 = vld [vmem:[#allocation4] sm:$0xff]
    %v39 = vld [vmem:[#allocation4 + $0x8] sm:$0xff]
    %v40 = vld [vmem:[#allocation2] sm:$0x1]
    %v41 = vadd.f32 %v38, %v39
    %v42 = vrot.slane %v41, 4
    %v43 = vadd.f32 %v41, %v42
    %v44 = vrot.slane %v43, 2
    %v45 = vadd.f32 %v43, %v44
    %v46 = vrot.slane %v45, 1
    %v47 = vadd.f32 %v45, %v46
    %v48 = vadd.f32 %v40, %v47
    %49 = vst [vmem:[#allocation2] sm:$0x1] %v48
    %v50 = vld [vmem:[#allocation3] sm:$0x1]
    %v51 = vmul.f32 %v38, %v38
    %v52 = vmul.f32 %v39, %v39
    %v53 = vadd.f32 %v51, %v52
    %v54 = vrot.slane %v53, 4
    %v55 = vadd.f32 %v53, %v54
    %v56 = vrot.slane %v55, 2
    %v57 = vadd.f32 %v55, %v56
    %v58 = vrot.slane %v57, 1
    %v59 = vadd.f32 %v57, %v58
    %v60 = vadd.f32 %v50, %v59
    %61 = vst [vmem:[#allocation3] sm:$0x1] %v60
    // Predicated region
    $region22: #{tpu_custom_call.1} parent=1 // pred_check
      %p62 = pneg %p32
    $region23: #{tpu_custom_call.1} parent=1 // pred_check_branch
      %64 = sbr.rel (%p62) target = $region25
    $region24: #{tpu_custom_call.1} parent=1 // pred_region
      %v65 = vld [vmem:[#allocation2] sm:$0x1]
      %v66 = vmul.f32 %v65, 0.125
      %v67 = vld [vmem:[#allocation3] sm:$0x1]
      %v68 = vmul.f32 %v67, 0.125
      %v69 = vmul.f32 %v66, %v66
      %v70 = vsub.f32 %v68, %v69
      %v71 = vld [vmem:[%s1] sm:$0x1]
      %v72 = vadd.f32 %v70, 1e-05
      %v73 = vrsqrt.pop %v72
      %v74 = vmul.f32 %v71, %v73
      %75 = vst [vmem:[#allocation7] sm:$0x1] %v74
      %v76 = vld [vmem:[%s2] sm:$0x1]
      %v77 = vmul.f32 %v66, %v74
      %v78 = vsub.f32 %v76, %v77
      %79 = vst [vmem:[#allocation8] sm:$0x1] %v78
    $region25: #{tpu_custom_call.1} parent=1 // pred_fallthru
      _
    // Predicated region
    $region26: #{tpu_custom_call.1} parent=1 // pred_check
      _
    $region27: #{tpu_custom_call.1} parent=1 // pred_check_branch
      %81 = sbr.rel (0) target = $region29
    $region28: #{tpu_custom_call.1} parent=1 // pred_region
      %s83 = ssub.s32 16, 16
      %84 = vsyncadd [#allocation6], %s83
      %s86 = sshll.u32 [#allocation7], 4
      %s87 = int_to_ptr.vmem [resolvable:$true] %s86
      %89 = dma.vmem_to_hbm [thread:$0]  %s87, 16, %s3, [#allocation6]
    $region29: #{tpu_custom_call.1} parent=1 // pred_fallthru
      _
    // Predicated region
    $region30: #{tpu_custom_call.1} parent=1 // pred_check
      _
    $region31: #{tpu_custom_call.1} parent=1 // pred_check_branch
      %91 = sbr.rel (0) target = $region33
    $region32: #{tpu_custom_call.1} parent=1 // pred_region
      %s93 = ssub.s32 16, 16
      %94 = vsyncadd [#allocation9], %s93
      %s96 = sshll.u32 [#allocation8], 4
      %s97 = int_to_ptr.vmem [resolvable:$true] %s96
      %99 = dma.vmem_to_hbm [thread:$0]  %s97, 16, %s4, [#allocation9]
    $region33: #{tpu_custom_call.1} parent=1 // pred_fallthru
      _
    // Predicated region
    $region34: #{tpu_custom_call.1} parent=1 // pred_check
      _
    $region35: #{tpu_custom_call.1} parent=1 // pred_check_branch
      %101 = sbr.rel (0) target = $region37
    $region36: #{tpu_custom_call.1} parent=1 // pred_region
      %102 = dma.done [#allocation6], 16
    $region37: #{tpu_custom_call.1} parent=1 // pred_fallthru
      _
    // Predicated region
    $region38: #{tpu_custom_call.1} parent=1 // pred_check
      _
    $region39: #{tpu_custom_call.1} parent=1 // pred_check_branch
      %104 = sbr.rel (0) target = $region41
    $region40: #{tpu_custom_call.1} parent=1 // pred_region
      %105 = dma.done [#allocation9], 16
    $region41: #{tpu_custom_call.1} parent=1 // pred_fallthru
      _
    %106 = vsyncpa [#allocation5], 1
    %107 = vsyncpa [#allocation6], 1
    %108 = vsyncpa [#allocation9], 1

</llo_original>
